<compile_context>
chip_gen: v7x
topology: tpu7x:2x2x1
jax: 0.10.0
libtpu: 0.0.40
codegen_flags: <defaults>
</compile_context>

<pallas_src>
import functools

import jax
import jax.numpy as jnp
from jax import lax
from jax.experimental import pallas as pl
from jax.experimental.pallas import tpu as pltpu

EPS = 1e-5            # PyTorch InstanceNorm3d default eps
NEG_SLOPE = 0.1       # LeakyReLU negative_slope
VMEM_LIMIT_BYTES = 48 * 1024 * 1024   # below v7x's 64 MiB physical VMEM


def _round_up(x, m):
    return (x + m - 1) // m * m


# -------------------- pltpu.roll sign calibration (runs outside jit) -------------------- #
# Tap shifts rely on pltpu.roll matching jnp.roll semantics (out[i] = x[(i - shift) % n]).
# A tiny probe verifies this once and flips the convention if it ever differs.
_ROLL_MATCHES_JNP = True


def calibrate_roll_sign():
    global _ROLL_MATCHES_JNP

    def k(x_ref, o_ref):
        o_ref[...] = pltpu.roll(x_ref[...], 3, axis=1)

    x = jnp.arange(8 * 128, dtype=jnp.float32).reshape(8, 128)
    y = pl.pallas_call(k, out_shape=jax.ShapeDtypeStruct((8, 128), jnp.float32))(x)
    _ROLL_MATCHES_JNP = bool(jnp.array_equal(y, jnp.roll(x, 3, axis=1)))


def _shift_for(off, L):
    """pltpu.roll shift realizing out[l] = x[l + off] on the (non-wrapping) used range."""
    off = off % L
    return (L - off) % L if _ROLL_MATCHES_JNP else off


# ----------------------------------- Pallas kernels ----------------------------------- #
def _shifted_matmul(x_refs, w_refs, shifts):
    """acc[co, l] = sum_src sum_t  W_src[t] @ x_src[:, l + off_t]   (bf16 in, f32 acc).
    Tap shifts are in-VMEM lane rotations (pltpu.roll) -> no im2col in HBM."""
    acc = None
    for x_ref, w_ref in zip(x_refs, w_refs):
        xv = x_ref[0]                                           # (Cin, L) bf16
        for t, sh in enumerate(shifts):
            xs = xv if sh == 0 else pltpu.roll(xv, sh, axis=1)
            d = jnp.dot(w_ref[t], xs, preferred_element_type=jnp.float32)
            acc = d if acc is None else acc + d
    return acc


def _transconv_kernel(x_ref, w_ref, b_ref, o_ref, *, shifts):
    """All stride^3 sub-pixel phases fused into one matmul stream (M = s^3*Cout)."""
    acc = _shifted_matmul([x_ref], [w_ref], shifts)             # (s^3*Cout, L) f32
    o_ref[0] = (acc + b_ref[...]).astype(o_ref.dtype)


def _conv_in_act_kernel(*refs, n_src, shifts, inv_n):
    """Fused Conv3d (K^3 shifted matmuls) + InstanceNorm(affine) + LeakyReLU.
    Conv bias is dropped (cancels exactly in InstanceNorm). Stats are masked to valid
    voxels; invalid voxels are zeroed so the next stage can re-embed with a flat roll."""
    mask_ref = refs[0]
    x_refs = refs[1:1 + n_src]
    w_refs = refs[1 + n_src:1 + 2 * n_src]
    g_ref = refs[1 + 2 * n_src]
    be_ref = refs[2 + 2 * n_src]
    o_ref = refs[3 + 2 * n_src]

    acc = _shifted_matmul(x_refs, w_refs, shifts)               # (Cout, L) f32
    m = mask_ref[...]                                           # (1, L) valid-voxel mask
    ssum = jnp.sum(acc * m, axis=1, keepdims=True)              # (Cout, 1)
    ssq = jnp.sum(acc * acc * m, axis=1, keepdims=True)
    # TODO(synk): E[x^2]-mean^2 is cancellation-prone for large-mean activations (Welford).
    mean = ssum * inv_n
    var = ssq * inv_n - mean * mean
    scale = g_ref[...] * lax.rsqrt(var + EPS)
    shift = be_ref[...] - mean * scale
    y = acc * scale + shift
    y = jnp.where(y >= 0, y, NEG_SLOPE * y) * m
    o_ref[0] = y.astype(o_ref.dtype)


# ----------------------------------- call wrappers ------------------------------------ #
def _transconv_call(x_lin, w_stk, b_row, shifts, out_dtype):
    N, Cin, L = x_lin.shape
    T, M, _ = w_stk.shape
    return pl.pallas_call(
        functools.partial(_transconv_kernel, shifts=shifts),
        out_shape=jax.ShapeDtypeStruct((N, M, L), out_dtype),
        grid=(N,),
        in_specs=[pl.BlockSpec((1, Cin, L), lambda n: (n, 0, 0)),
                  pl.BlockSpec((T, M, Cin), lambda n: (0, 0, 0)),
                  pl.BlockSpec((M, 1), lambda n: (0, 0))],
        out_specs=pl.BlockSpec((1, M, L), lambda n: (n, 0, 0)),
        compiler_params=pltpu.CompilerParams(
            dimension_semantics=("parallel",),
            vmem_limit_bytes=VMEM_LIMIT_BYTES),
    )(x_lin, w_stk, b_row)


def _conv_in_act_call(x_lins, w_stks, gamma, beta, mask, shifts, inv_n, out_dtype):
    N, _, L = x_lins[0].shape
    Cout = w_stks[0].shape[1]
    n_src = len(x_lins)

    in_specs = [pl.BlockSpec((1, L), lambda n: (0, 0))]
    inputs = [mask]
    for xl in x_lins:
        in_specs.append(pl.BlockSpec((1, xl.shape[1], L), lambda n: (n, 0, 0)))
        inputs.append(xl)
    for ws in w_stks:
        in_specs.append(pl.BlockSpec(ws.shape, lambda n: (0, 0, 0)))
        inputs.append(ws)
    in_specs += [pl.BlockSpec((Cout, 1), lambda n: (0, 0))] * 2
    inputs += [gamma.reshape(Cout, 1).astype(jnp.float32),
               beta.reshape(Cout, 1).astype(jnp.float32)]

    return pl.pallas_call(
        functools.partial(_conv_in_act_kernel, n_src=n_src, shifts=shifts, inv_n=inv_n),
        out_shape=jax.ShapeDtypeStruct((N, Cout, L), out_dtype),
        grid=(N,),
        in_specs=in_specs,
        out_specs=pl.BlockSpec((1, Cout, L), lambda n: (n, 0, 0)),
        compiler_params=pltpu.CompilerParams(
            dimension_semantics=("parallel",),
            vmem_limit_bytes=VMEM_LIMIT_BYTES),
    )(*inputs)


# --------------------------------------- forward -------------------------------------- #
def conv_up_forward(x, x_encoder, params, *, stride, K):
    """x: (N, Cin, D, H, W); x_encoder: (N, Cout, D*s, H*s, W*s). Returns NCDHW f32."""
    N, Cin, D, H, W = x.shape
    Cout = params["bt"].shape[0]
    Cenc = x_encoder.shape[1]
    s = stride
    p = (K - 1) // 2
    OD, OH, OW = D * s, H * s, W * s

    # ---- conv_trans: phase-fused sub-pixel transposed conv (conv_only + bias) ----
    lo = K - 1 - p
    taps = [(k, (lo - k) % s, ((lo - k) % s + k - lo) // s) for k in range(K)]
    js = [j for _, _, j in taps]
    jmin, jmax = min(js), max(js)
    pad_lo, pad_hi = max(0, -jmin), max(0, jmax)
    Dt, Ht, Wt = D + pad_lo + pad_hi, H + pad_lo + pad_hi, W + pad_lo + pad_hi
    Lt_data = Dt * Ht * Wt
    Lt = _round_up(Lt_data, 128)

    xt = jnp.pad(x.astype(jnp.bfloat16), ((0, 0), (0, 0)) + ((pad_lo, pad_hi),) * 3)
    xt = jnp.pad(xt.reshape(N, Cin, Lt_data), ((0, 0), (0, 0), (0, Lt - Lt_data)))

    # equivalent direct (cross-correlation) weight: (Cout, Cin, K, K, K)
    w_eq = jnp.transpose(jnp.flip(params["wt"], (2, 3, 4)), (1, 0, 2, 3, 4))
    zero_blk = jnp.zeros((Cout, Cin), w_eq.dtype)
    offs_t, w_blocks = [], []
    for jd in range(jmin, jmax + 1):
        for jh in range(jmin, jmax + 1):
            for jw in range(jmin, jmax + 1):
                offs_t.append((jd + pad_lo) * Ht * Wt + (jh + pad_lo) * Wt + (jw + pad_lo))
                rows = []
                for rd in range(s):
                    for rh in range(s):
                        for rw in range(s):
                            kd, kh, kw = lo - rd + jd * s, lo - rh + jh * s, lo - rw + jw * s
                            ok = 0 <= kd < K and 0 <= kh < K and 0 <= kw < K
                            rows.append(w_eq[:, :, kd, kh, kw] if ok else zero_blk)
                w_blocks.append(jnp.concatenate(rows, axis=0))     # (s^3*Cout, Cin)
    w_t = jnp.stack(w_blocks, 0).astype(jnp.bfloat16)              # (T, s^3*Cout, Cin)
    b_t = jnp.tile(params["bt"], s ** 3).reshape(s ** 3 * Cout, 1).astype(jnp.float32)
    shifts_t = tuple(_shift_for(o, Lt) for o in offs_t)

    y_t = _transconv_call(xt, w_t, b_t, shifts_t, jnp.bfloat16)    # (N, s^3*Cout, Lt)

    # single pixel-shuffle transpose back to NCDHW (bf16) for the skip-concat stage
    y_t = y_t[:, :, :Lt_data].reshape(N, s, s, s, Cout, Dt, Ht, Wt)[..., :D, :H, :W]
    x0 = jnp.transpose(y_t, (0, 4, 5, 1, 6, 2, 7, 3)).reshape(N, Cout, OD, OH, OW)

    # ---- conv1 / conv2: fused Conv3d + InstanceNorm(affine) + LeakyReLU ----
    Dp, Hp, Wp = OD + 2 * p, OH + 2 * p, OW + 2 * p
    Lc_data = Dp * Hp * Wp
    Lc = _round_up(Lc_data, 128)
    offs_c = [kd * Hp * Wp + kh * Wp + kw
              for kd in range(K) for kh in range(K) for kw in range(K)]
    shifts_c = tuple(_shift_for(o, Lc) for o in offs_c)
    inv_n = 1.0 / float(OD * OH * OW)

    mask = jnp.pad(jnp.ones((OD, OH, OW), jnp.float32),
                   ((0, Dp - OD), (0, Hp - OH), (0, Wp - OW))).reshape(1, Lc_data)
    mask = jnp.pad(mask, ((0, 0), (0, Lc - Lc_data)))

    def prep(a):   # cast to bf16 BEFORE padding, flatten, lane-pad to multiple of 128
        ap = jnp.pad(a.astype(jnp.bfloat16), ((0, 0), (0, 0)) + ((p, p),) * 3)
        return jnp.pad(ap.reshape(a.shape[0], a.shape[1], Lc_data),
                       ((0, 0), (0, 0), (0, Lc - Lc_data)))

    def wstack(w):  # (Cout, Cin_sub, K,K,K) -> (K^3, Cout, Cin_sub) bf16 in (kd,kh,kw) order
        return jnp.transpose(w, (2, 3, 4, 0, 1)).reshape(
            K ** 3, w.shape[0], w.shape[1]).astype(jnp.bfloat16)

    # conv1: cat([x_encoder, x0]) never materialized (two streams / weight halves);
    # b1 dropped (a per-channel constant bias cancels exactly in InstanceNorm).
    x1_lin = _conv_in_act_call(
        [prep(x_encoder), prep(x0)],
        [wstack(params["w1"][:, :Cenc]), wstack(params["w1"][:, Cenc:])],
        params["g1"], params["be1"], mask, shifts_c, inv_n, jnp.bfloat16)

    # conv2: x1 stays in the flattened matmul layout; re-embedding it as conv2's padded
    # input is a single flat roll by (+1,+1,+1) in (d,h,w) (invalid voxels already zero).
    x2_in = jnp.roll(x1_lin, Hp * Wp + Wp + 1, axis=-1)
    x2_lin = _conv_in_act_call(
        [x2_in], [wstack(params["w2"])],
        params["g2"], params["be2"], mask, shifts_c, inv_n, jnp.float32)

    out = x2_lin[:, :, :Lc_data].reshape(N, Cout, Dp, Hp, Wp)[:, :, :OD, :OH, :OW]
    return out


# -------------------------------- pure-JAX reference ---------------------------------- #
def ref_forward(x, x_encoder, params, *, stride, K):
    dn = ("NCDHW", "OIDHW", "NCDHW")
    p = (K - 1) // 2
    op = stride - 1
    lo, hi = K - 1 - p, K - 1 - p + op
    w_eq = jnp.transpose(jnp.flip(params["wt"], axis=(2, 3, 4)), (1, 0, 2, 3, 4))
    x0 = lax.conv_general_dilated(x, w_eq, (1, 1, 1), [(lo, hi)] * 3,
                                  lhs_dilation=(stride,) * 3, dimension_numbers=dn,
                                  precision=lax.Precision.HIGHEST)
    x0 = x0 + params["bt"].reshape(1, -1, 1, 1, 1)

    def conv_in_act(xin, w, b, g, be):
        y = lax.conv_general_dilated(xin, w, (1, 1, 1), [(p, p)] * 3,
                                     dimension_numbers=dn,
                                     precision=lax.Precision.HIGHEST)
        y = y + b.reshape(1, -1, 1, 1, 1)
        mean = y.mean(axis=(2, 3, 4), keepdims=True)
        var = ((y - mean) ** 2).mean(axis=(2, 3, 4), keepdims=True)
        yn = (y - mean) * lax.rsqrt(var + EPS)
        yn = yn * g.reshape(1, -1, 1, 1, 1) + be.reshape(1, -1, 1, 1, 1)
        return jnp.where(yn >= 0, yn, NEG_SLOPE * yn)

    x1 = conv_in_act(jnp.concatenate([x_encoder, x0], axis=1),
                     params["w1"], params["b1"], params["g1"], params["be1"])
    x2 = conv_in_act(x1, params["w2"], params["b2"], params["g2"], params["be2"])
    return x2


# ------------------------------------------ main --------------------------------------- #
if __name__ == "__main__":
    # Conv_Up(dim=3, in_features=8, out_features=4, strides=(2,2,2), kernel_size=3)
    in_features, out_features = 8, 4
    stride, K = 2, 3
    N, D, H, W = 2, 4, 4, 4

    calibrate_roll_sign()   # one tiny probe pallas_call, executed outside jit

    key = jax.random.PRNGKey(0)
    ks = jax.random.split(key, 8)
    params = dict(
        # ConvTranspose3d weight: (in_channels, out_channels, K, K, K), bias: (out,)
        wt=0.1 * jax.random.normal(ks[0], (in_features, out_features, K, K, K), jnp.float32),
        bt=0.05 * jax.random.normal(ks[1], (out_features,), jnp.float32),
        # Conv3d weight: (out_channels, in_channels, K, K, K)
        w1=0.1 * jax.random.normal(ks[2], (out_features, out_features * 2, K, K, K), jnp.float32),
        b1=0.05 * jax.random.normal(ks[3], (out_features,), jnp.float32),
        g1=jnp.ones((out_features,), jnp.float32),
        be1=jnp.zeros((out_features,), jnp.float32),
        w2=0.1 * jax.random.normal(ks[4], (out_features, out_features, K, K, K), jnp.float32),
        b2=0.05 * jax.random.normal(ks[5], (out_features,), jnp.float32),
        g2=jnp.ones((out_features,), jnp.float32),
        be2=jnp.zeros((out_features,), jnp.float32),
    )

    x = jax.random.normal(ks[6], (N, in_features, D, H, W), jnp.float32)
    x_encoder = jax.random.normal(
        ks[7], (N, out_features, D * stride, H * stride, W * stride), jnp.float32)

    fwd = jax.jit(functools.partial(conv_up_forward, stride=stride, K=K))
    out = jax.block_until_ready(fwd(x, x_encoder, params))

    ref = ref_forward(x, x_encoder, params, stride=stride, K=K)
    assert out.shape == (N, out_features, D * stride, H * stride, W * stride), out.shape
    max_err = float(jnp.max(jnp.abs(out - ref)))
    # bf16 MXU operands / bf16 inter-stage activations vs f32 HIGHEST reference.
    assert jnp.allclose(out, ref, rtol=5e-2, atol=5e-2), f"max abs err = {max_err}"
    print("KERNEL_OK")
</pallas_src>

<mosaic_0001>
module attributes {stable_mosaic.version = 11 : i64} {
  func.func @k(%arg0: memref<8x128xf32, #tpu.memory_space<vmem>>, %arg1: memref<8x128xf32, #tpu.memory_space<vmem>>) attributes {dimension_semantics = [], scalar_prefetch = 0 : i64, scratch_operands = 0 : i64, tpu.core_type = #tpu.core_type<tc>} {
    %c0 = arith.constant 0 : index
    %c0_0 = arith.constant 0 : index
    %0 = vector.load %arg0[%c0, %c0_0] : memref<8x128xf32, #tpu.memory_space<vmem>>, vector<8x128xf32>
    %c3_i32 = arith.constant 3 : i32
    %1 = tpu.dynamic_rotate %0 by %c3_i32 dim 1 : vector<8x128xf32>, i32 -> vector<8x128xf32>
    %c0_1 = arith.constant 0 : index
    %c0_2 = arith.constant 0 : index
    %2 = vector.load %arg1[%c0_1, %c0_2] : memref<8x128xf32, #tpu.memory_space<vmem>>, vector<8x128xf32>
    tpu.vector_store %arg1[%c0_1, %c0_2], %1 {strides = array<i32>} : memref<8x128xf32, #tpu.memory_space<vmem>>, vector<8x128xf32>,
    return
  }
}

</mosaic_0001>

<llo_original>
// kernel: tpu_custom_call.1
$region0: #{tpu_custom_call.1}
  #allocation0 [shape = 'u32[]', space=smem, size = 0x4, offset = 0x4, fixed_abs, tag = 'smem constant byte address 0x4 - core index']
  #allocation1 [shape = 'u32[144,128]{1,0:T(1,128)}', space=vmem, size = 0x12000, scoped, tag = 'internal scratch']
  %s0 = inlined_call_operand.hbm [shape: f32[8,128], index: 0, kind: input, shape index: {}]
  %s1 = inlined_call_operand.hbm [shape: f32[8,128], index: 1, kind: output, shape index: {}]
  %s2 = sld [smem:[#allocation0]]
  $region18: #{tpu_custom_call.1} parent=0
    _
  %s4 = ssub.s32 1, %s2
  %s5 = scalar_select 0, %s4, %s2
  $region1: #{tpu_custom_call.1} parent=0
    #allocation2 [shape = 'u8[4096]{0}', space=vmem, size = 0x1000, scoped, tag = 'input window, operand 0, single buffered']
    #allocation3 [shape = 's32[1]{0}', space=sflag, size = 0x4, scoped, tag = 'scoped memory for tpu_custom_call.1']
    #allocation4 [shape = 's32[1]{0}', space=sflag, size = 0x4, scoped, tag = 'scoped memory for tpu_custom_call.1']
    #allocation5 [shape = 'u8[4096]{0}', space=vmem, size = 0x1000, scoped, tag = 'output window, operand 0, single buffered']
    %6 = vsyncpa [#allocation3], 0
    %7 = vsyncpa [#allocation4], 0
    // Predicated region
    $region2: #{tpu_custom_call.1} parent=1 // pred_check
      _
    $region3: #{tpu_custom_call.1} parent=1 // pred_check_branch
      %9 = sbr.rel (0) target = $region5
    $region4: #{tpu_custom_call.1} parent=1 // pred_region
      %s11 = ssub.s32 128, 128
      %12 = vsyncadd [#allocation3], %s11
      %s14 = sshll.u32 [#allocation2], 4
      %s15 = int_to_ptr.vmem [resolvable:$true] %s14
      %17 = dma.hbm_to_vmem [thread:$0]  %s0, 128, %s15, [#allocation3]
    $region5: #{tpu_custom_call.1} parent=1 // pred_fallthru
      _
    // Predicated region
    $region6: #{tpu_custom_call.1} parent=1 // pred_check
      _
    $region7: #{tpu_custom_call.1} parent=1 // pred_check_branch
      %19 = sbr.rel (0) target = $region9
    $region8: #{tpu_custom_call.1} parent=1 // pred_region
      %20 = dma.done [#allocation3], 128
    $region9: #{tpu_custom_call.1} parent=1 // pred_fallthru
      _
    %v21 = vld [vmem:[#allocation2] sm:$0xff]
    %22 = vrot.lane.b32.xlu0 %v21, 3
    %v23 = vpop.permute.xlu0 %22
    %24 = vst [vmem:[#allocation5] sm:$0xff] %v23
    // Predicated region
    $region10: #{tpu_custom_call.1} parent=1 // pred_check
      _
    $region11: #{tpu_custom_call.1} parent=1 // pred_check_branch
      %26 = sbr.rel (0) target = $region13
    $region12: #{tpu_custom_call.1} parent=1 // pred_region
      %s28 = ssub.s32 128, 128
      %29 = vsyncadd [#allocation4], %s28
      %s31 = sshll.u32 [#allocation5], 4
      %s32 = int_to_ptr.vmem [resolvable:$true] %s31
      %34 = dma.vmem_to_hbm [thread:$0]  %s32, 128, %s1, [#allocation4]
    $region13: #{tpu_custom_call.1} parent=1 // pred_fallthru
      _
    // Predicated region
    $region14: #{tpu_custom_call.1} parent=1 // pred_check
      _
    $region15: #{tpu_custom_call.1} parent=1 // pred_check_branch
      %36 = sbr.rel (0) target = $region17
    $region16: #{tpu_custom_call.1} parent=1 // pred_region
      %37 = dma.done [#allocation4], 128
    $region17: #{tpu_custom_call.1} parent=1 // pred_fallthru
      _
    %38 = vsyncpa [#allocation3], 1
    %39 = vsyncpa [#allocation4], 1

</llo_original>
